<compile_context>
chip_gen: v6e
topology: v6e:2x2x1
jax: 0.10.0
libtpu: 0.0.40
codegen_flags: <defaults>
</compile_context>

<pallas_src>
import functools

import jax
import jax.numpy as jnp
from jax.experimental import pallas as pl
from jax.experimental.pallas import tpu as pltpu


def _round_up(x, m):
    return ((x + m - 1) // m) * m


# ---------------------------------------------------------------------------
# Kernel: per-loss gradient sum-of-squares.
#   input  : grads viewed as [L, rows, 128] (native dtype)
#   grid   : (L, kt) — kt tiles the row axis, accumulated in VMEM scratch
#   output : [L, 1, 128] lane-wise partial sums (final sum + sqrt done in jnp)
# ---------------------------------------------------------------------------
def _row_sumsq_kernel(g_ref, o_ref, acc_ref, *, tile_rows, rows_valid, mask_needed):
    k = pl.program_id(1)

    @pl.when(k == 0)
    def _():
        acc_ref[...] = jnp.zeros_like(acc_ref)

    # (tile_rows, 128) block, upcast in-vreg (keeps HBM traffic at native width).
    g = g_ref[...].astype(jnp.float32)

    if mask_needed:
        # Last tile may run past the real row count; zero the stale rows.
        row = k * tile_rows + jax.lax.broadcasted_iota(
            jnp.int32, (tile_rows, 128), 0)
        g = jnp.where(row < rows_valid, g, 0.0)

    # Pure VPU in steady state: square + accumulate, no cross-lane reduce.
    acc_ref[...] += g * g

    @pl.when(k == pl.num_programs(1) - 1)
    def _():
        # One sublane reduce per loss, epilogue only.
        o_ref[...] = jnp.sum(acc_ref[...], axis=0, keepdims=True)  # (1, 128)


def compute_norms_pallas(grads_flat, tile_rows=2048):
    """grads_flat: [L, N] (any float dtype) -> per-row Frobenius norms [L] f32."""
    L, N = grads_flat.shape

    # Pad the lane axis to a multiple of 128 only if needed (zero-preserving).
    lane_pad = (-N) % 128
    if lane_pad:
        grads_flat = jnp.pad(grads_flat, ((0, 0), (0, lane_pad)))
    rows = (N + lane_pad) // 128
    g3 = grads_flat.reshape(L, rows, 128)  # contiguous -> free reshape

    tr = _round_up(min(tile_rows, _round_up(rows, 8)), 8)
    kt = pl.cdiv(rows, tr)
    mask_needed = (rows % tr) != 0

    kernel = functools.partial(
        _row_sumsq_kernel, tile_rows=tr, rows_valid=rows, mask_needed=mask_needed)

    partial_sums = pl.pallas_call(
        kernel,
        out_shape=jax.ShapeDtypeStruct((L, 1, 128), jnp.float32),
        grid=(L, kt),
        in_specs=[pl.BlockSpec((None, tr, 128), lambda l, k: (l, k, 0))],
        out_specs=pl.BlockSpec((None, 1, 128), lambda l, k: (l, 0, 0)),
        scratch_shapes=[pltpu.VMEM((tr, 128), jnp.float32)],
        compiler_params=pltpu.CompilerParams(
            dimension_semantics=("parallel", "arbitrary")),
    )(g3)

    # Tiny final cross-lane reduce + sqrt: plain jnp, fused by XLA.
    return jnp.sqrt(jnp.sum(partial_sums[:, 0, :], axis=-1))


# ---------------------------------------------------------------------------
# MTLGradNorm (stateful Python wrapper mirroring the nn.Module semantics)
# ---------------------------------------------------------------------------
class MTLGradNorm:
    def __init__(self, config):
        self.config = config
        self.weights = None
        self.history = []
        self.wait = 0
        self._norms_jit = None  # cached jitted (jacrev + pallas) pipeline

    def reset(self):
        self.weights = None
        self.history = []

    def _get_norms_fn(self, losses_fn):
        if self._norms_jit is None:
            def fn(norm_layers):
                # One batched backward over the task axis: [L, *param_shape],
                # produced contiguously in exactly the layout the kernel reads.
                grads = jax.jacrev(losses_fn)(norm_layers)
                L = grads.shape[0]
                return compute_norms_pallas(grads.reshape(L, -1))
            self._norms_jit = jax.jit(fn)
        return self._norms_jit

    def compute_norms(self, losses_fn, norm_layers):
        # TODO(synk): torch.autograd.grad(create_graph=True) (higher-order graph
        # retention) has no in-kernel Pallas equivalent; differentiation is done
        # with jax.jacrev in the wrapper.
        return self._get_norms_fn(losses_fn)(norm_layers)

    def forward(self, losses, losses_fn, norm_layers, split):
        if split == 'train':
            self.wait += 1
            if self.wait == self.config['mtl_norm_period']:
                self.history.append(self.compute_norms(losses_fn, norm_layers))
                if len(self.history) > self.config['mtl_norm_length']:
                    self.history.pop(0)
                # H x L is ~a dozen floats: plain jnp, no kernel launch.
                hist = jnp.stack(self.history, axis=0)          # [H, L]
                mean_norms = jnp.mean(hist, axis=0)             # [L]
                self.weights = jnp.mean(mean_norms) / (mean_norms + 1e-8)
                self.wait = 0
        if self.weights is not None:
            return self.weights
        return jnp.ones_like(losses)


# ---------------------------------------------------------------------------
# Demo / self-check
# ---------------------------------------------------------------------------
if __name__ == "__main__":
    key = jax.random.PRNGKey(0)
    k_w, k_x, k_h, k_y, k_g = jax.random.split(key, 5)

    B, D, L = 8, 32, 3            # batch, hidden, number of tasks/losses
    W = jax.random.normal(k_w, (D, D), dtype=jnp.float32) * 0.1   # shared "norm layer"
    x = jax.random.normal(k_x, (B, D), dtype=jnp.float32)
    heads = jax.random.normal(k_h, (L, D, D), dtype=jnp.float32) * 0.1
    targets = jax.random.normal(k_y, (L, B, D), dtype=jnp.float32)

    def losses_fn(w):
        preds = jnp.einsum('bd,de,lef->lbf', x, w, heads)          # [L, B, D]
        return jnp.mean((preds - targets) ** 2, axis=(1, 2))       # [L]

    losses = losses_fn(W)                                          # [L]

    # --- unit test: norm kernel with ragged width, multiple tiles, bf16 grads ---
    g_test = (jax.random.normal(k_g, (3, 2100), dtype=jnp.float32)
              ).astype(jnp.bfloat16)
    norms_test = jax.block_until_ready(compute_norms_pallas(g_test, tile_rows=8))
    norms_test_ref = jnp.sqrt(
        jnp.sum(g_test.astype(jnp.float32) ** 2, axis=-1))
    assert jnp.allclose(norms_test, norms_test_ref, rtol=1e-4, atol=1e-4), (
        norms_test, norms_test_ref)

    # --- full module behaviour ---
    config = {'mtl_norm_period': 2, 'mtl_norm_length': 3}
    mtl = MTLGradNorm(config)

    # step 1: wait < period -> ones_like(losses)
    w0 = mtl.forward(losses, losses_fn, W, split='train')
    assert w0.shape == (L,)
    assert jnp.allclose(w0, jnp.ones_like(losses))

    # steps 2..6: every `period` steps the weights are (re)computed via Pallas
    weights = None
    for _ in range(5):
        weights = mtl.forward(losses, losses_fn, W, split='train')
    weights = jax.block_until_ready(weights)

    # pure-JAX reference for the whole pipeline
    grads_ref = jax.jacrev(losses_fn)(W).reshape(L, -1)
    norms_ref = jnp.sqrt(jnp.sum(grads_ref * grads_ref, axis=-1))          # [L]
    hist_ref = jnp.stack([norms_ref] * len(mtl.history), axis=0)           # same grads every step
    mean_norms_ref = jnp.mean(hist_ref, axis=0)
    weights_ref = jnp.mean(mean_norms_ref) / (mean_norms_ref + 1e-8)
    assert jnp.allclose(weights, weights_ref, rtol=1e-5, atol=1e-5), (weights, weights_ref)

    # eval split just returns the stored weights
    w_eval = jax.block_until_ready(mtl.forward(losses, losses_fn, W, split='val'))
    assert jnp.allclose(w_eval, weights)

    print("KERNEL_OK")
</pallas_src>

<mosaic_0001>
module attributes {stable_mosaic.version = 11 : i64} {
  func.func @_row_sumsq_kernel(%arg0: i32, %arg1: i32, %arg2: memref<1x8x128xbf16, #tpu.memory_space<vmem>>, %arg3: memref<1x1x128xf32, #tpu.memory_space<vmem>>, %arg4: memref<8x128xf32, #tpu.memory_space<vmem>>) attributes {dimension_semantics = [#tpu.dimension_semantics<parallel>, #tpu.dimension_semantics<arbitrary>], iteration_bounds = array<i64: 3, 3>, scalar_prefetch = 0 : i64, scratch_operands = 1 : i64, tpu.core_type = #tpu.core_type<tc>, window_params = [{transform_indices = @transform_0, window_bounds = array<i64: 1, 8, 128>}, {transform_indices = @transform_1, window_bounds = array<i64: 1, 1, 128>}]} {
    %c0_i32 = arith.constant 0 : i32
    %0 = arith.cmpi eq, %arg1, %c0_i32 : i32
    %1 = arith.extui %0 : i1 to i32
    %c0_i32_0 = arith.constant 0 : i32
    %2 = arith.cmpi ne, %1, %c0_i32_0 : i32
    scf.if %2 {
      %cst_8 = arith.constant 0.000000e+00 : f32
      %21 = vector.broadcast %cst_8 : f32 to vector<8x128xf32>
      %c0_9 = arith.constant 0 : index
      %c0_10 = arith.constant 0 : index
      %22 = vector.load %arg4[%c0_9, %c0_10] : memref<8x128xf32, #tpu.memory_space<vmem>>, vector<8x128xf32>
      tpu.vector_store %arg4[%c0_9, %c0_10], %21 {strides = array<i32>} : memref<8x128xf32, #tpu.memory_space<vmem>>, vector<8x128xf32>,
    } else {
    }
    %c0 = arith.constant 0 : index
    %c0_1 = arith.constant 0 : index
    %c0_2 = arith.constant 0 : index
    %3 = vector.load %arg2[%c0, %c0_1, %c0_2] : memref<1x8x128xbf16, #tpu.memory_space<vmem>>, vector<1x8x128xbf16>
    %4 = vector.shape_cast %3 : vector<1x8x128xbf16> to vector<8x128xbf16>
    %5 = arith.extf %4 : vector<8x128xbf16> to vector<8x128xf32>
    %c8_i32 = arith.constant 8 : i32
    %6 = arith.muli %arg1, %c8_i32 : i32
    %7 = tpu.iota {dimensions = array<i32: 0>} : vector<8x128xi32>
    %8 = vector.broadcast %6 : i32 to vector<8x128xi32>
    %9 = arith.addi %8, %7 : vector<8x128xi32>
    %c17_i32 = arith.constant 17 : i32
    %10 = vector.broadcast %c17_i32 : i32 to vector<8x128xi32>
    %11 = arith.cmpi slt, %9, %10 : vector<8x128xi32>
    %cst = arith.constant 0.000000e+00 : f32
    %12 = vector.broadcast %cst : f32 to vector<8x128xf32>
    %13 = arith.select %11, %5, %12 : vector<8x128xi1>, vector<8x128xf32>
    %c0_3 = arith.constant 0 : index
    %c0_4 = arith.constant 0 : index
    %14 = vector.load %arg4[%c0_3, %c0_4] : memref<8x128xf32, #tpu.memory_space<vmem>>, vector<8x128xf32>
    %15 = arith.mulf %13, %13 : vector<8x128xf32>
    %16 = arith.addf %14, %15 : vector<8x128xf32>
    %c0_5 = arith.constant 0 : index
    %c0_6 = arith.constant 0 : index
    %17 = vector.load %arg4[%c0_5, %c0_6] : memref<8x128xf32, #tpu.memory_space<vmem>>, vector<8x128xf32>
    tpu.vector_store %arg4[%c0_5, %c0_6], %16 {strides = array<i32>} : memref<8x128xf32, #tpu.memory_space<vmem>>, vector<8x128xf32>,
    %c2_i32 = arith.constant 2 : i32
    %18 = arith.cmpi eq, %arg1, %c2_i32 : i32
    %19 = arith.extui %18 : i1 to i32
    %c0_i32_7 = arith.constant 0 : i32
    %20 = arith.cmpi ne, %19, %c0_i32_7 : i32
    scf.if %20 {
      %c0_8 = arith.constant 0 : index
      %c0_9 = arith.constant 0 : index
      %21 = vector.load %arg4[%c0_8, %c0_9] : memref<8x128xf32, #tpu.memory_space<vmem>>, vector<8x128xf32>
      %cst_10 = arith.constant dense<0.000000e+00> : vector<128xf32>
      %22 = vector.multi_reduction <add>, %21, %cst_10 [0] : vector<8x128xf32> to vector<128xf32>
      %23 = vector.shape_cast %22 : vector<128xf32> to vector<1x128xf32>
      %c0_11 = arith.constant 0 : index
      %c0_12 = arith.constant 0 : index
      %c0_13 = arith.constant 0 : index
      %24 = vector.load %arg3[%c0_11, %c0_12, %c0_13] : memref<1x1x128xf32, #tpu.memory_space<vmem>>, vector<1x1x128xf32>
      %25 = vector.shape_cast %24 : vector<1x1x128xf32> to vector<1x128xf32>
      %26 = vector.shape_cast %23 : vector<1x128xf32> to vector<1x1x128xf32>
      tpu.vector_store %arg3[%c0_11, %c0_12, %c0_13], %26 {strides = array<i32>} : memref<1x1x128xf32, #tpu.memory_space<vmem>>, vector<1x1x128xf32>,
    } else {
    }
    return
  }
  func.func @transform_0(%arg0: i32, %arg1: i32) -> (i32, i32, i32) {
    %c0_i32 = arith.constant 0 : i32
    %c0_i32_0 = arith.constant 0 : i32
    return %arg0, %arg1, %c0_i32 : i32, i32, i32
  }
  func.func @transform_1(%arg0: i32, %arg1: i32) -> (i32, i32, i32) {
    %c0_i32 = arith.constant 0 : i32
    %c0_i32_0 = arith.constant 0 : i32
    %c0_i32_1 = arith.constant 0 : i32
    return %arg0, %c0_i32, %c0_i32_0 : i32, i32, i32
  }
}

</mosaic_0001>

<llo_original>
// kernel: tpu_custom_call.1
$region0: #{tpu_custom_call.1}
  #allocation0 [shape = 'u32[]', space=smem, size = 0x4, offset = 0x4, fixed_abs, tag = 'smem constant byte address 0x4 - core index']
  #allocation1 [shape = 'u32[144,128]{1,0:T(1,128)}', space=vmem, size = 0x12000, scoped, tag = 'internal scratch']
  #allocation2 [shape = 'f32[8,128]{1,0:T(8,128)}', space=vmem, size = 0x1000, scoped, tag = 'scratch operand']
  %s0 = inlined_call_operand.vmem [shape: bf16[3,17,128], index: 0, kind: input, shape index: {}]
  %s1 = inlined_call_operand.hbm [shape: f32[3,1,128], index: 1, kind: output, shape index: {}]
  %s2 = sld [smem:[#allocation0]]
  $region45: #{tpu_custom_call.1} parent=0
    _
  %s4 = ssub.s32 1, %s2
  %s5 = scalar_select 0, %s4, %s2
  $region1: #{tpu_custom_call.1} parent=0
    #allocation3 [shape = 'u8[1024]{0}', space=vmem, size = 0x400, scoped, tag = 'output window, operand 0']
    #allocation4 [shape = 's32[2]{0}', space=sflag, size = 0x8, scoped, tag = 'scoped memory for tpu_custom_call.1']
    %6 = vsyncpa [#allocation4], 0
    %s7 = scalar_lea.sflag [#allocation4], 1
    %8 = vsyncpa %s7, 0
    loop: start=0, step=1, limit=11
    $region2: #{tpu_custom_call.1} parent=1 // loop_pre_header
      _
    $region3: #{tpu_custom_call.1} parent=1 // loop_header
      %s10 = sphi 0, %s14
      %p11 = scmp.ge.s32.totalorder %s10, 11
      %s17 = sphi 0, %s29
      %s18 = sphi 0, %s25
      %s19 = sphi 0, %s17
      %s20 = sphi 0, %s18
      %s21 = sphi 0, %s19
      %s22 = sphi 0, %s20
      %s34 = sphi 0, %s36
      %s37 = sphi 0, %s34
      %s38 = sphi 0, %s37
      %s54 = sphi 0, %s38
      %s60 = sphi 0, %s62
      %s63 = sphi 0, %s60
      %s64 = sphi 0, %s63
      %s80 = sphi 0, %s64
    $region4: #{tpu_custom_call.1} parent=1 // loop_header_branch
      %13 = sbr.rel (%p11) target = $region8
    $region5: #{tpu_custom_call.1} parent=1 // loop_body
      %s15 = ssub.s32 %s10, 1
      %s16 = ssub.s32 %s10, 2
      %s23 = sadd.s32 1, %s18
      %p24 = scmp.ge.s32.totalorder %s23, 3
      %s25 = scalar_select %p24, 0, %s23
      %s26 = sadd.s32 1, %s17
      %s27 = scalar_select %p24, %s26, %s17
      %p28 = scmp.ge.s32.totalorder %s27, 3
      %s29 = scalar_select %p28, 0, %s27
      %s30 = ssub.s32 %s17, %s29
      %s31 = ssub.s32 %s18, %s25
      %s32 = sor.u32 %s30, %s31
      %p33 = scmp.eq.s32.totalorder %s32, 0
      %s35 = sadd.s32 %s34, 1
      %s36 = scalar_select %p33, %s34, %s35
      %p39 = pneg %p33
      %p40 = scmp.eq.s32.totalorder %s10, 8
      %p41 = por %p39, %p40
      %p42 = scmp.ne.s32.totalorder %s34, %s37
      %p43 = scmp.eq.s32.totalorder %s10, 0
      %p44 = por %p42, %p43
      %p45 = scmp.ne.s32.totalorder %s34, %s37
      %p46 = scmp.eq.s32.totalorder %s15, 8
      %p47 = por %p45, %p46
      %p48 = scmp.ne.s32.totalorder %s37, %s38
      %p49 = scmp.eq.s32.totalorder %s15, 0
      %p50 = por %p48, %p49
      %p51 = scmp.ne.s32.totalorder %s37, %s38
      %p52 = scmp.eq.s32.totalorder %s16, 8
      %p53 = por %p51, %p52
      %p55 = scmp.ne.s32.totalorder %s38, %s54
      %p56 = scmp.eq.s32.totalorder %s16, 0
      %p57 = por %p55, %p56
      %s58 = ssub.s32 %s17, %s29
      %p59 = scmp.eq.s32.totalorder %s58, 0
      %s61 = sadd.s32 %s60, 1
      %s62 = scalar_select %p59, %s60, %s61
      %p65 = pneg %p59
      %p66 = scmp.eq.s32.totalorder %s10, 8
      %p67 = por %p65, %p66
      %p68 = scmp.ne.s32.totalorder %s60, %s63
      %p69 = scmp.eq.s32.totalorder %s10, 0
      %p70 = por %p68, %p69
      %p71 = scmp.ne.s32.totalorder %s60, %s63
      %p72 = scmp.eq.s32.totalorder %s15, 8
      %p73 = por %p71, %p72
      %p74 = scmp.ne.s32.totalorder %s63, %s64
      %p75 = scmp.eq.s32.totalorder %s15, 0
      %p76 = por %p74, %p75
      %p77 = scmp.ne.s32.totalorder %s63, %s64
      %p78 = scmp.eq.s32.totalorder %s16, 8
      %p79 = por %p77, %p78
      %p81 = scmp.ne.s32.totalorder %s64, %s80
      %p82 = scmp.eq.s32.totalorder %s16, 0
      %p83 = por %p81, %p82
      %p84 = scmp.le.s32.totalorder 1, %s10
      %p85 = scmp.lt.s32.totalorder %s10, 10
      %p86 = pnand %p84, %p85
      %p87 = pneg %p86
      // Predicated region
      $region9: #{tpu_custom_call.1} parent=5 // pred_check
        _
      $region10: #{tpu_custom_call.1} parent=5 // pred_check_branch
        %89 = sbr.rel (%p86) target = $region12
      $region11: #{tpu_custom_call.1} parent=5 // pred_region
        %s90 = ssub.s32 %s10, 1
      $region12: #{tpu_custom_call.1} parent=5 // pred_fallthru
        _
      %p91 = scmp.lt.s32.totalorder %s10, 9
      // Predicated region
      $region13: #{tpu_custom_call.1} parent=5 // pred_check
        %p92 = pneg %p91
      $region14: #{tpu_custom_call.1} parent=5 // pred_check_branch
        %94 = sbr.rel (%p92) target = $region16
      $region15: #{tpu_custom_call.1} parent=5 // pred_region
        // Predicated region
        $region17: #{tpu_custom_call.1} parent=15 // pred_check
          %p95 = pneg %p44
        $region18: #{tpu_custom_call.1} parent=15 // pred_check_branch
          %97 = sbr.rel (%p95) target = $region20
        $region19: #{tpu_custom_call.1} parent=15 // pred_region
          %p98 = scmp.lt.s32.totalorder %s17, 2
          %s99 = scalar_select %p98, %s17, 2
          %p100 = scmp.lt.s32.totalorder %s18, 2
          %s101 = scalar_select %p100, %s18, 2
          %s102 = smul.addr %s99, 3
          %s103 = sadd.s32 %s101, %s102
          %s104 = smul.addr %s103, 4
          %s105 = scalar_lea.vmem %s0, %s104
        $region20: #{tpu_custom_call.1} parent=15 // pred_fallthru
          _
      $region16: #{tpu_custom_call.1} parent=5 // pred_fallthru
        _
      %p106 = scmp.le.s32.totalorder 1, %s10
      %p107 = scmp.lt.s32.totalorder %s10, 10
      %p108 = pnand %p106, %p107
      %p109 = pneg %p108
      // Predicated region
      $region21: #{tpu_custom_call.1} parent=5 // pred_check
        _
      $region22: #{tpu_custom_call.1} parent=5 // pred_check_branch
        %111 = sbr.rel (%p108) target = $region24
      $region23: #{tpu_custom_call.1} parent=5 // pred_region
        %s112 = ssub.s32 %s10, 1
        %p113 = scmp.lt.s32.totalorder %s19, 2
        %s114 = scalar_select %p113, %s19, 2
        %p115 = scmp.lt.s32.totalorder %s20, 2
        %s116 = scalar_select %p115, %s20, 2
        %s117 = smul.addr %s114, 3
        %s118 = sadd.s32 %s116, %s117
        %s119 = smul.addr %s118, 4
        %s120 = scalar_lea.vmem %s0, %s119
        %p121 = pneg %p50
        %p122 = pneg %p47
        %p123 = pneg %p76
        %p124 = pneg %p73
        %s125 = sand.u32 %s63, 1
        %s126 = scalar_lea.sflag [#allocation4], %s125
        %s127 = sand.u32 %s63, 1
        %s128 = scalar_lea.vmem [#allocation3], %s127
        %p129 = scmp.lt.s32.totalorder %s19, 2
        %s130 = scalar_select %p129, %s19, 2
        %p131 = scmp.lt.s32.totalorder %s20, 2
        %s132 = scalar_select %p131, %s20, 2
        %s133 = smul.addr %s130, 3
        %s134 = sadd.s32 %s132, %s133
        %s135 = smul.addr %s134, 4
        %s136 = scalar_lea.vmem %s0, %s135
        %p137 = scmp.eq.s32.totalorder %s20, 0
        // Predicated region
        $region25: #{tpu_custom_call.1} parent=23 // pred_check
          %p138 = pneg %p137
        $region26: #{tpu_custom_call.1} parent=23 // pred_check_branch
          %140 = sbr.rel (%p138) target = $region28
        $region27: #{tpu_custom_call.1} parent=23 // pred_region
          %141 = vst [vmem:[#allocation2] sm:$0xff] 0.0
        $region28: #{tpu_custom_call.1} parent=23 // pred_fallthru
          _
        %v142 = vld [vmem:[%s136] sm:$0xf]
        %v143 = vunpack.c.l.bf16 %v142
        %s144 = smul.u32 %s20, 8
        %v145 = vlaneseq
        %v146 = vshrl.u32 %v145, 7
        %v147 = vstv %s144
        %v148 = vadd.s32 %v147, %v146
        %vm149 = vcmp.lt.s32.totalorder %v148, 17
        %v150 = vsel %vm149, %v143, 0.0
        %v151 = vld [vmem:[#allocation2] sm:$0xff]
        %v152 = vmul.f32 %v150, %v150
        %v153 = vadd.f32 %v151, %v152
        %154 = vst [vmem:[#allocation2] sm:$0xff] %v153
        %p155 = scmp.eq.s32.totalorder %s20, 2
        // Predicated region
        $region29: #{tpu_custom_call.1} parent=23 // pred_check
          %p156 = pneg %p155
        $region30: #{tpu_custom_call.1} parent=23 // pred_check_branch
          %158 = sbr.rel (%p156) target = $region32
        $region31: #{tpu_custom_call.1} parent=23 // pred_region
          %v159 = vld [vmem:[#allocation2] sm:$0xff]
          %v160 = vrot.slane %v159, 4
          %v161 = vadd.f32 %v159, %v160
          %v162 = vrot.slane %v161, 2
          %v163 = vadd.f32 %v161, %v162
          %v164 = vrot.slane %v163, 1
          %v165 = vadd.f32 %v163, %v164
          %166 = vst [vmem:[%s128] sm:$0x1] %v165
        $region32: #{tpu_custom_call.1} parent=23 // pred_fallthru
          _
        %s167 = sand.u32 %s63, 1
        %s168 = scalar_lea.sflag [#allocation4], %s167
        %s169 = sand.u32 %s63, 1
        %s170 = scalar_lea.vmem [#allocation3], %s169
        // Predicated region
        $region33: #{tpu_custom_call.1} parent=23 // pred_check
          %p171 = pneg %p73
        $region34: #{tpu_custom_call.1} parent=23 // pred_check_branch
          %173 = sbr.rel (%p171) target = $region36
        $region35: #{tpu_custom_call.1} parent=23 // pred_region
          %s175 = ssub.s32 16, 16
          %176 = vsyncadd %s168, %s175
          %s177 = smul.addr %s19, 16
          %s178 = scalar_lea.hbm %s1, %s177
          %s180 = sshll.u32 %s170, 4
          %s181 = int_to_ptr.vmem [resolvable:$true] %s180
          %183 = dma.vmem_to_hbm [thread:$0]  %s181, 16, %s178, %s168
        $region36: #{tpu_custom_call.1} parent=23 // pred_fallthru
          _
      $region24: #{tpu_custom_call.1} parent=5 // pred_fallthru
        _
      %p184 = scmp.le.s32.totalorder 2, %s10
      // Predicated region
      $region37: #{tpu_custom_call.1} parent=5 // pred_check
        %p185 = pneg %p184
      $region38: #{tpu_custom_call.1} parent=5 // pred_check_branch
        %187 = sbr.rel (%p185) target = $region40
      $region39: #{tpu_custom_call.1} parent=5 // pred_region
        %s188 = ssub.s32 %s10, 2
        // Predicated region
        $region41: #{tpu_custom_call.1} parent=39 // pred_check
          %p189 = pneg %p79
        $region42: #{tpu_custom_call.1} parent=39 // pred_check_branch
          %191 = sbr.rel (%p189) target = $region44
        $region43: #{tpu_custom_call.1} parent=39 // pred_region
          %s192 = sand.u32 %s64, 1
          %s193 = scalar_lea.sflag [#allocation4], %s192
          %s194 = sand.u32 %s64, 1
          %s195 = scalar_lea.vmem [#allocation3], %s194
          %196 = dma.done %s193, 16
        $region44: #{tpu_custom_call.1} parent=39 // pred_fallthru
          _
      $region40: #{tpu_custom_call.1} parent=5 // pred_fallthru
        _
    $region6: #{tpu_custom_call.1} parent=1 // loop_footer
      %s14 = sadd.s32 1, %s10
    $region7: #{tpu_custom_call.1} parent=1 // loop_footer_branch
      %9 = sbr.rel target = $region3
    $region8: #{tpu_custom_call.1} parent=1 // loop_exit
      _
    %197 = vsyncpa [#allocation4], 1
    %s198 = scalar_lea.sflag [#allocation4], 1
    %199 = vsyncpa %s198, 1

</llo_original>
